<compile_context>
chip_gen: v7x
topology: tpu7x:2x2x1
jax: 0.10.0
libtpu: 0.0.40
codegen_flags: <defaults>
</compile_context>

<pallas_src>
from itertools import product

import numpy as np
import jax
import jax.numpy as jnp
from jax.experimental import pallas as pl
from jax.experimental.pallas import tpu as pltpu


# ----------------------------------------------------------------------------
# Deterministic parameter construction, mirroring ConfigurationDetector1.__init__
# ----------------------------------------------------------------------------
def build_params(s: int, p: int):
    rows = s * 9 ** p
    cols = 8 * p + s
    w = np.zeros((rows, cols), dtype=np.float32)
    b = np.zeros((rows,), dtype=np.float32)

    subs = (None, 0, 1, 2, 3)

    def generate_i():
        for i_nonempty in product(*p * [subs]):
            cands = [(None,) if j is None else (None, j) for j in i_nonempty]
            for i_top in product(*cands):
                yield (*i_top, *i_nonempty)

    def convert_to_tensor_indices(i):
        offsets = range(0, 8 * p, 4)
        return tuple(a + o for a, o in zip(i, offsets) if a is not None)

    counter = 0
    for i in generate_i():
        slc = convert_to_tensor_indices(i)
        k = len(slc)
        for z in range(s):
            if k == 0:
                w[counter, 8 * p + z] = 1.0
            else:
                w[counter, list(slc)] = 1.0
                w[counter, 8 * p + z] = k * (4 * p + 2)
                b[counter] = -k * (4 * p + 2)
            counter += 1
    assert counter == rows
    return w, b


def _round_up(x: int, m: int) -> int:
    return (x + m - 1) // m * m


# ----------------------------------------------------------------------------
# Pallas kernel: out = clamp(x_aug @ Wt_aug, 0, 1)   (bias folded into Wt_aug)
# ----------------------------------------------------------------------------
def _detector_kernel(x_ref, wt_ref, o_ref):
    y = jnp.dot(x_ref[...], wt_ref[...], preferred_element_type=jnp.float32)
    # saturated ReLU: min(max(y, 0), 1)
    o_ref[...] = jnp.clip(y, 0.0, 1.0).astype(o_ref.dtype)


def configuration_detector1(
    x: jax.Array, w: jax.Array, b: jax.Array, *, tb_max: int = 512, tn_max: int = 1024
) -> jax.Array:
    """x: (B, 8p+s) f32, w: (s*9^p, 8p+s), b: (s*9^p,). Returns (B, s*9^p) f32."""
    B, f_in = x.shape
    f_out = w.shape[0]
    k = f_in + 1  # augmented contraction dim (bias folded in)

    # ---- tile sizing -------------------------------------------------------
    tb = min(tb_max, _round_up(B, 8))            # batch tile (multiple of 8)
    b_pad = _round_up(B, tb)
    tn = min(tn_max, _round_up(f_out, 128))      # lane-dense output tile
    f_out_pad = _round_up(f_out, tn)

    # ---- augmented / padded operands --------------------------------------
    # Wt_aug: (f_in+1, f_out_pad); last row carries the bias; padded columns
    # are zero -> clamp(0, 0, 1) = 0, sliced off below.
    wt_aug = jnp.zeros((k, f_out_pad), dtype=jnp.float32)
    wt_aug = wt_aug.at[:f_in, :f_out].set(w.T.astype(jnp.float32))
    wt_aug = wt_aug.at[f_in, :f_out].set(b.astype(jnp.float32))

    # x_aug: (b_pad, f_in+1) with a ones column so the bias rides the matmul.
    x_aug = jnp.zeros((b_pad, k), dtype=jnp.float32)
    x_aug = x_aug.at[:B, :f_in].set(x.astype(jnp.float32))
    x_aug = x_aug.at[:, f_in].set(1.0)

    # Batch axis innermost -> weight tile index (0, j) constant across it.
    grid = (f_out_pad // tn, b_pad // tb)

    # VMEM budget: double-buffered x/out/weight tiles + headroom (capped for v7x's 64 MiB).
    tile_bytes = 4 * (tb * k + tb * tn + k * tn)
    vmem_limit = int(min(64 * 1024 * 1024,
                         max(32 * 1024 * 1024, 2 * tile_bytes + (4 << 20))))

    out_pad = pl.pallas_call(
        _detector_kernel,
        out_shape=jax.ShapeDtypeStruct((b_pad, f_out_pad), jnp.float32),
        grid_spec=pltpu.PrefetchScalarGridSpec(
            num_scalar_prefetch=0,
            grid=grid,
            in_specs=[
                pl.BlockSpec((tb, k), lambda j, i: (i, 0)),   # x tile
                pl.BlockSpec((k, tn), lambda j, i: (0, j)),   # weight tile (resident over i)
            ],
            out_specs=pl.BlockSpec((tb, tn), lambda j, i: (i, j)),
        ),
        compiler_params=pltpu.CompilerParams(
            dimension_semantics=("parallel", "parallel"),
            vmem_limit_bytes=vmem_limit,
        ),
    )(x_aug, wt_aug)

    return out_pad[:B, :f_out]


# ----------------------------------------------------------------------------
# Demo / self-check
# ----------------------------------------------------------------------------
if __name__ == "__main__":
    # Case 1: s=4, p=1 -> F_in = 12, F_out = 36 (padded to 128 lanes), B = 8
    s, p = 4, 1
    B = 8
    w_np, b_np = build_params(s, p)
    w = jnp.asarray(w_np)
    b = jnp.asarray(b_np)

    key = jax.random.PRNGKey(0)
    x = jax.random.uniform(key, (B, 8 * p + s), dtype=jnp.float32)

    out = jax.block_until_ready(configuration_detector1(x, w, b))
    ref = jnp.clip(x @ w.T + b, 0.0, 1.0)
    assert out.shape == (B, s * 9 ** p)
    assert jnp.allclose(out, ref, atol=1e-5), "mismatch vs reference (case 1)"

    # Case 2 exercises the grid + padding paths:
    # s=4, p=2 -> F_in = 20, F_out = 324 (padded to 384); B = 520 -> 2 batch tiles of 512.
    s2, p2 = 4, 2
    B2 = 520
    w2_np, b2_np = build_params(s2, p2)
    w2 = jnp.asarray(w2_np)
    b2 = jnp.asarray(b2_np)
    x2 = jax.random.uniform(jax.random.PRNGKey(1), (B2, 8 * p2 + s2), dtype=jnp.float32)

    out2 = jax.block_until_ready(configuration_detector1(x2, w2, b2))
    ref2 = jnp.clip(x2 @ w2.T + b2, 0.0, 1.0)
    assert out2.shape == (B2, s2 * 9 ** p2)
    assert jnp.allclose(out2, ref2, atol=1e-5), "mismatch vs reference (case 2)"

    print("KERNEL_OK")
</pallas_src>

<mosaic_0001>
module attributes {stable_mosaic.version = 11 : i64} {
  func.func @_detector_kernel(%arg0: i32, %arg1: i32, %arg2: memref<8x13xf32, #tpu.memory_space<vmem>>, %arg3: memref<13x128xf32, #tpu.memory_space<vmem>>, %arg4: memref<8x128xf32, #tpu.memory_space<vmem>>) attributes {dimension_semantics = [#tpu.dimension_semantics<parallel>, #tpu.dimension_semantics<parallel>], iteration_bounds = array<i64: 1, 1>, scalar_prefetch = 0 : i64, scratch_operands = 0 : i64, tpu.core_type = #tpu.core_type<tc>, window_params = [{transform_indices = @transform_0, window_bounds = array<i64: 8, 13>}, {transform_indices = @transform_1, window_bounds = array<i64: 13, 128>}, {transform_indices = @transform_2, window_bounds = array<i64: 8, 128>}]} {
    %c0 = arith.constant 0 : index
    %c0_0 = arith.constant 0 : index
    %0 = vector.load %arg2[%c0, %c0_0] : memref<8x13xf32, #tpu.memory_space<vmem>>, vector<8x13xf32>
    %c0_1 = arith.constant 0 : index
    %c0_2 = arith.constant 0 : index
    %1 = vector.load %arg3[%c0_1, %c0_2] : memref<13x128xf32, #tpu.memory_space<vmem>>, vector<13x128xf32>
    %cst = arith.constant dense<0.000000e+00> : vector<8x128xf32>
    %2 = tpu.matmul %0, %1, %cst {dimension_numbers = #tpu.dot_dimension_numbers<[1], [0], [0], [1], [0, 0, 1, 1], [], []>} : vector<8x13xf32>, vector<13x128xf32>, vector<8x128xf32> -> vector<8x128xf32>
    %cst_3 = arith.constant 0.000000e+00 : f32
    %cst_4 = arith.constant 1.000000e+00 : f32
    %3 = vector.broadcast %cst_3 : f32 to vector<8x128xf32>
    %4 = arith.maximumf %3, %2 : vector<8x128xf32>
    %5 = vector.broadcast %cst_4 : f32 to vector<8x128xf32>
    %6 = arith.minimumf %5, %4 : vector<8x128xf32>
    %c0_5 = arith.constant 0 : index
    %c0_6 = arith.constant 0 : index
    %7 = vector.load %arg4[%c0_5, %c0_6] : memref<8x128xf32, #tpu.memory_space<vmem>>, vector<8x128xf32>
    tpu.vector_store %arg4[%c0_5, %c0_6], %6 {strides = array<i32>} : memref<8x128xf32, #tpu.memory_space<vmem>>, vector<8x128xf32>,
    return
  }
  func.func @transform_0(%arg0: i32, %arg1: i32) -> (i32, i32) {
    %c0_i32 = arith.constant 0 : i32
    %c0_i32_0 = arith.constant 0 : i32
    return %arg1, %c0_i32 : i32, i32
  }
  func.func @transform_1(%arg0: i32, %arg1: i32) -> (i32, i32) {
    %c0_i32 = arith.constant 0 : i32
    %c0_i32_0 = arith.constant 0 : i32
    return %c0_i32, %arg0 : i32, i32
  }
  func.func @transform_2(%arg0: i32, %arg1: i32) -> (i32, i32) {
    %c0_i32 = arith.constant 0 : i32
    return %arg1, %arg0 : i32, i32
  }
}

</mosaic_0001>

<llo_original>
// kernel: tpu_custom_call.1
$region0: #{tpu_custom_call.1}
  #allocation0 [shape = 'u32[]', space=smem, size = 0x4, offset = 0x4, fixed_abs, tag = 'smem constant byte address 0x4 - core index']
  #allocation1 [shape = 'u32[144,128]{1,0:T(1,128)}', space=vmem, size = 0x12000, scoped, tag = 'internal scratch']
  %s0 = inlined_call_operand.hbm [shape: f32[8,13], index: 0, kind: input, shape index: {}]
  %s1 = inlined_call_operand.hbm [shape: f32[13,128], index: 1, kind: input, shape index: {}]
  %s2 = inlined_call_operand.hbm [shape: f32[8,128], index: 2, kind: output, shape index: {}]
  %s3 = sld [smem:[#allocation0]]
  $region26: #{tpu_custom_call.1} parent=0
    _
  %s5 = ssub.s32 1, %s3
  %s6 = scalar_select 0, %s5, %s3
  $region1: #{tpu_custom_call.1} parent=0
    #allocation2 [shape = 'u8[4096]{0}', space=vmem, size = 0x1000, scoped, tag = 'input window, operand 0, single buffered']
    #allocation3 [shape = 's32[1]{0}', space=sflag, size = 0x4, scoped, tag = 'scoped memory for tpu_custom_call.1']
    #allocation4 [shape = 's32[1]{0}', space=sflag, size = 0x4, scoped, tag = 'scoped memory for tpu_custom_call.1']
    #allocation5 [shape = 'u8[8192]{0}', space=vmem, size = 0x2000, scoped, tag = 'input window, operand 1, single buffered']
    #allocation6 [shape = 's32[1]{0}', space=sflag, size = 0x4, scoped, tag = 'scoped memory for tpu_custom_call.1']
    #allocation7 [shape = 'u8[4096]{0}', space=vmem, size = 0x1000, scoped, tag = 'output window, operand 0, single buffered']
    %7 = vsyncpa [#allocation3], 0
    %8 = vsyncpa [#allocation6], 0
    %9 = vsyncpa [#allocation4], 0
    // Predicated region
    $region2: #{tpu_custom_call.1} parent=1 // pred_check
      _
    $region3: #{tpu_custom_call.1} parent=1 // pred_check_branch
      %11 = sbr.rel (0) target = $region5
    $region4: #{tpu_custom_call.1} parent=1 // pred_region
      %s13 = ssub.s32 128, 128
      %14 = vsyncadd [#allocation3], %s13
      %s16 = sshll.u32 [#allocation2], 4
      %s17 = int_to_ptr.vmem [resolvable:$true] %s16
      %19 = dma.hbm_to_vmem [thread:$0]  %s0, 128, %s17, [#allocation3]
    $region5: #{tpu_custom_call.1} parent=1 // pred_fallthru
      _
    // Predicated region
    $region6: #{tpu_custom_call.1} parent=1 // pred_check
      _
    $region7: #{tpu_custom_call.1} parent=1 // pred_check_branch
      %21 = sbr.rel (0) target = $region9
    $region8: #{tpu_custom_call.1} parent=1 // pred_region
      %s23 = ssub.s32 256, 256
      %24 = vsyncadd [#allocation6], %s23
      %s25 = sshll.u32 [#allocation5], 4
      %s26 = int_to_ptr.vmem [resolvable:$true] %s25
      %31 = dma.hbm_to_vmem [thread:$0]  %s1, 256, %s26, [#allocation6], 128, 128, 8
    $region9: #{tpu_custom_call.1} parent=1 // pred_fallthru
      _
    // Predicated region
    $region10: #{tpu_custom_call.1} parent=1 // pred_check
      _
    $region11: #{tpu_custom_call.1} parent=1 // pred_check_branch
      %33 = sbr.rel (0) target = $region13
    $region12: #{tpu_custom_call.1} parent=1 // pred_region
      %34 = dma.done [#allocation3], 128
    $region13: #{tpu_custom_call.1} parent=1 // pred_fallthru
      _
    // Predicated region
    $region14: #{tpu_custom_call.1} parent=1 // pred_check
      _
    $region15: #{tpu_custom_call.1} parent=1 // pred_check_branch
      %36 = sbr.rel (0) target = $region17
    $region16: #{tpu_custom_call.1} parent=1 // pred_region
      %37 = dma.done [#allocation6], 256
    $region17: #{tpu_custom_call.1} parent=1 // pred_fallthru
      _
    %v38 = vld [vmem:[#allocation2] sm:$0xff]
    %v39 = vld [vmem:[#allocation5] sm:$0xff]
    %v40 = vld [vmem:[#allocation5 + $0x8] sm:$0x1f]
    %vm41 = vcmask 105472
    %v43 = vsel %vm41, %v38, 0
    %vm45 = vcmask 1044480
    %v47 = vsel %vm45, %v40, 0
    %49 = vmatprep.subr.mxu0 0.0
    %50 = vmatpush1.msra.mxu0 %v39
    %51 = vmatprep.subr.mxu0 0.0
    %52 = vmatpush1.msra.mxu0 %v47
    %53 = vmatprep.subr.mxu0 0.0
    %54 = vmatpush1.msra.mxu0 0.0
    %55 = vmatprep.subr.mxu0 0.0
    %56 = vmatpush1.msra.mxu0 0.0
    %57 = vmatprep.subr.mxu0 0.0
    %58 = vmatpush1.msra.mxu0 0.0
    %59 = vmatprep.subr.mxu0 0.0
    %60 = vmatpush1.msra.mxu0 0.0
    %61 = vmatprep.subr.mxu0 0.0
    %62 = vmatpush1.msra.mxu0 0.0
    %63 = vmatprep.subr.mxu0 0.0
    %64 = vmatpush1.msra.mxu0 0.0
    %65 = vmatprep.subr.mxu0 0.0
    %66 = vmatpush1.msra.mxu0 0.0
    %67 = vmatprep.subr.mxu0 0.0
    %68 = vmatpush1.msra.mxu0 0.0
    %69 = vmatprep.subr.mxu0 0.0
    %70 = vmatpush1.msra.mxu0 0.0
    %71 = vmatprep.subr.mxu0 0.0
    %72 = vmatpush1.msra.mxu0 0.0
    %73 = vmatprep.subr.mxu0 0.0
    %74 = vmatpush1.msra.mxu0 0.0
    %75 = vmatprep.subr.mxu0 0.0
    %76 = vmatpush1.msra.mxu0 0.0
    %77 = vmatprep.subr.mxu0 0.0
    %78 = vmatpush1.msra.mxu0 0.0
    %79 = vmatprep.subr.mxu0 0.0
    %80 = vmatpush1.msra.mxu0 0.0
    %81 = vmatprep.subr.mxu0 0.0
    %82 = vmatpush1.msra.mxu0 0.0
    %83 = vmatprep.subr.mxu0 0.0
    %84 = vmatpush1.msra.mxu0 0.0
    %85 = vmatprep.subr.mxu0 0.0
    %86 = vmatpush1.msra.mxu0 0.0
    %87 = vmatprep.subr.mxu0 0.0
    %88 = vmatpush1.msra.mxu0 0.0
    %89 = vmatprep.subr.mxu0 0.0
    %90 = vmatpush1.msra.mxu0 0.0
    %91 = vmatprep.subr.mxu0 0.0
    %92 = vmatpush1.msra.mxu0 0.0
    %93 = vmatprep.subr.mxu0 0.0
    %94 = vmatpush1.msra.mxu0 0.0
    %95 = vmatprep.subr.mxu0 0.0
    %96 = vmatpush1.msra.mxu0 0.0
    %97 = vmatprep.subr.mxu0 0.0
    %98 = vmatpush1.msra.mxu0 0.0
    %99 = vmatprep.subr.mxu0 0.0
    %100 = vmatpush1.msra.mxu0 0.0
    %101 = vmatprep.subr.mxu0 0.0
    %102 = vmatpush1.msra.mxu0 0.0
    %103 = vmatprep.subr.mxu0 0.0
    %104 = vmatpush1.msra.mxu0 0.0
    %105 = vmatprep.subr.mxu0 0.0
    %106 = vmatpush1.msra.mxu0 0.0
    %107 = vmatprep.subr.mxu0 0.0
    %108 = vmatpush1.msra.mxu0 0.0
    %109 = vmatprep.subr.mxu0 0.0
    %110 = vmatpush1.msra.mxu0 0.0
    %111 = vmatprep.subr.mxu0 0.0
    %112 = vmatpush1.msra.mxu0 0.0
    %113 = vmatprep.mubr.f32.mxu0 0.0
    %114 = vmatmul.mubr.f32.gmra.mrb[0].mxu0 %v43
    %v115 = vpop.f32.mrb[0].mxu0
    %v116 = vadd.f32 0.0, %v115
    %v117 = vpop.f32.mrb[0].mxu0
    %118 = vdwg.mxu0
    %v119 = vmax.f32 %v116, 0.0
    %v120 = vmin.f32 %v119, 1.0
    %121 = vst [vmem:[#allocation7] sm:$0xff] %v120
    // Predicated region
    $region18: #{tpu_custom_call.1} parent=1 // pred_check
      _
    $region19: #{tpu_custom_call.1} parent=1 // pred_check_branch
      %123 = sbr.rel (0) target = $region21
    $region20: #{tpu_custom_call.1} parent=1 // pred_region
      %s125 = ssub.s32 128, 128
      %126 = vsyncadd [#allocation4], %s125
      %s128 = sshll.u32 [#allocation7], 4
      %s129 = int_to_ptr.vmem [resolvable:$true] %s128
      %131 = dma.vmem_to_hbm [thread:$0]  %s129, 128, %s2, [#allocation4]
    $region21: #{tpu_custom_call.1} parent=1 // pred_fallthru
      _
    // Predicated region
    $region22: #{tpu_custom_call.1} parent=1 // pred_check
      _
    $region23: #{tpu_custom_call.1} parent=1 // pred_check_branch
      %133 = sbr.rel (0) target = $region25
    $region24: #{tpu_custom_call.1} parent=1 // pred_region
      %134 = dma.done [#allocation4], 128
    $region25: #{tpu_custom_call.1} parent=1 // pred_fallthru
      _
    %135 = vsyncpa [#allocation3], 1
    %136 = vsyncpa [#allocation6], 1
    %137 = vsyncpa [#allocation4], 1

</llo_original>
